<compile_context>
chip_gen: v6e
topology: v6e:2x2x1
jax: 0.10.0
libtpu: 0.0.40
codegen_flags: <defaults>
</compile_context>

<pallas_src>
import functools

import jax
import jax.numpy as jnp
from jax.experimental import pallas as pl
from jax.experimental.pallas import tpu as pltpu


_SUBLANES = 8
_LANES = 128


def _focal_loss_kernel(logits_ref, targets_ref, out_ref, acc_ref, *,
                       gamma, n_rows, tile_n, steps_per_par, needs_mask):
    """One (tile_n, C) block: accumulate per-row focal terms into acc_ref."""
    p = pl.program_id(0)   # parallel slot (megacore on v7x)
    j = pl.program_id(1)   # reduction step within this slot

    @pl.when(j == 0)
    def _init():
        acc_ref[...] = jnp.zeros_like(acc_ref)

    x_raw = logits_ref[...]                        # (tile_n, C) native dtype
    x = x_raw.astype(jnp.float32)                  # per-tile cast
    t = targets_ref[...]                           # (tile_n, 1) int32

    # Numerically stable log-sum-exp over the class axis.
    m = jnp.max(x, axis=-1, keepdims=True)         # (tile_n, 1)
    shifted = x - m                                 # (tile_n, C)
    lse = jnp.log(jnp.sum(jnp.exp(shifted), axis=-1, keepdims=True))  # (tile_n, 1)

    # Gather the target-class logit via compare+select against a small (1, C)
    # iota (broadcast in the compare); gather from the NATIVE dtype — exact,
    # since exactly one element per row survives the select.
    cls_idx = jax.lax.broadcasted_iota(jnp.int32, (1, x.shape[-1]), 1)  # (1, C)
    x_t = jnp.sum(jnp.where(cls_idx == t, x_raw, jnp.zeros([], x_raw.dtype)),
                  axis=-1, keepdims=True).astype(jnp.float32)           # (tile_n, 1)

    ce = (lse + m) - x_t                           # per-sample CE (reduction='none')
    pt = jnp.exp(-ce)
    w = jnp.maximum(1.0 - pt, 0.0)                 # clamp: ce may round slightly negative

    # (1 - pt) ** gamma: integer gamma -> repeated multiply (no pow on the EUP).
    if float(gamma) == int(gamma) and gamma >= 0:
        wg = jnp.ones_like(w)
        for _ in range(int(gamma)):
            wg = wg * w
    else:
        # Non-integer gamma: w==0 -> exp(-inf)=0 is the correct limit for gamma>0.
        wg = w ** jnp.float32(gamma)
    focal = wg * ce                                # (tile_n, 1)

    # Mask padded / overflow rows BEFORE accumulation (static no-op when the
    # logical grid covers exactly n_rows).
    if needs_mask:
        row0 = (p * steps_per_par + j) * tile_n
        rows = row0 + jax.lax.broadcasted_iota(jnp.int32, focal.shape, 0)
        focal = jnp.where(rows < n_rows, focal, 0.0)

    # Per-row accumulate: no per-step cross-sublane reduce, no serialized (1,1) RMW.
    acc_ref[...] += focal

    # Single XLU reduce + lane-dense writeback of this core's partial mean.
    @pl.when(j == steps_per_par - 1)
    def _finalize():
        total = jnp.sum(acc_ref[...], keepdims=True)            # (1, 1)
        out_ref[...] = jnp.broadcast_to(total * (1.0 / n_rows),
                                        (_SUBLANES, _LANES))


def _vmem_budgets():
    """Generation-aware (f32-tile budget, vmem_limit cap) from the TPU's VMEM size."""
    try:
        vmem_cap = int(pltpu.get_tpu_info().vmem_capacity_bytes)
    except Exception:
        vmem_cap = 64 * 1024 * 1024        # conservative (v7x-like) fallback
    if vmem_cap >= 96 * 1024 * 1024:       # v5e / v6e: 128 MiB physical VMEM
        return 8 * 1024 * 1024, 96 * 1024 * 1024
    else:                                  # v7x: 64 MiB per TensorCore
        return 4 * 1024 * 1024, 36 * 1024 * 1024


def _choose_tile_n(n, c, tile_budget_f32_bytes):
    """Rows per block, sized by bytes: big enough to amortize the ~0.35 us
    per-grid-step overhead, small enough that f32 temporaries plus the
    lane-padded (tile_n, 128) int32 targets block fit the VMEM budget."""
    if n <= _SUBLANES:
        return n                                    # full array dim -> always legal
    per_row_bytes = c * 4 + _LANES * 4              # f32 temp row + padded targets row
    max_rows = max(_SUBLANES, tile_budget_f32_bytes // per_row_bytes)
    tile = min(n, max_rows)
    return max(_SUBLANES, (tile // _SUBLANES) * _SUBLANES)


def focal_loss(logits, targets, gamma=2.0):
    """Pallas TPU implementation of FocalLoss(gamma, alpha=None).forward (mean).

    Callers should pass logits in their native dtype (e.g. bf16): the kernel is
    HBM-bound on v5e/v6e, so pre-casting to f32 doubles the bytes for nothing.
    """
    n, c = logits.shape
    targets_2d = targets.reshape(n, 1).astype(jnp.int32)

    tile_budget_f32, vmem_cap_limit = _vmem_budgets()
    tile_n = _choose_tile_n(n, c, tile_budget_f32)
    num_blocks = int(pl.cdiv(n, tile_n))

    # Use both TensorCores (v7x megacore) whenever there is more than one block.
    # Odd block counts are split evenly with one overflow grid point whose
    # index_map is clamped to a valid block; its rows are zeroed by the mask.
    num_par = 2 if num_blocks > 1 else 1
    steps = int(pl.cdiv(num_blocks, num_par))
    needs_mask = (num_par * steps * tile_n) != n

    if num_par * steps > num_blocks:
        def block_map(p, j):
            return (jnp.minimum(p * steps + j, num_blocks - 1), 0)
    else:
        def block_map(p, j):
            return (p * steps + j, 0)

    kernel = functools.partial(
        _focal_loss_kernel, gamma=float(gamma), n_rows=n,
        tile_n=tile_n, steps_per_par=steps, needs_mask=needs_mask)

    itemsize = jnp.dtype(logits.dtype).itemsize
    cost = pl.CostEstimate(
        flops=6 * n * c + 10 * n,
        transcendentals=n * c + 2 * n,
        bytes_accessed=n * c * itemsize + n * 4 + num_par * _SUBLANES * _LANES * 4,
    )

    # VMEM footprint estimate: double-buffered input blocks (logits + the
    # lane-padded targets block) + ~5 tile-sized f32 temporaries + accumulator,
    # capped per generation (v7x has only 64 MiB per TC).
    logits_block_bytes = tile_n * c * itemsize
    targets_block_bytes = tile_n * _LANES * 4
    temps_bytes = 5 * tile_n * c * 4
    est = (2 * (logits_block_bytes + targets_block_bytes) + temps_bytes
           + tile_n * 4 + 2 * _SUBLANES * _LANES * 4 + (2 << 20))
    vmem_limit = int(min(vmem_cap_limit, max(16 * 1024 * 1024, est)))

    out_tiles = pl.pallas_call(
        kernel,
        out_shape=jax.ShapeDtypeStruct((num_par * _SUBLANES, _LANES), jnp.float32),
        grid_spec=pltpu.PrefetchScalarGridSpec(
            num_scalar_prefetch=0,
            grid=(num_par, steps),
            in_specs=[
                pl.BlockSpec((tile_n, c), block_map),
                pl.BlockSpec((tile_n, 1), block_map),
            ],
            out_specs=pl.BlockSpec((_SUBLANES, _LANES), lambda p, j: (p, 0)),
            scratch_shapes=[pltpu.VMEM((tile_n, 1), jnp.float32)],
        ),
        compiler_params=pltpu.CompilerParams(
            dimension_semantics=("parallel", "arbitrary"),
            vmem_limit_bytes=vmem_limit,
        ),
        cost_estimate=cost,
    )(logits, targets_2d)   # native dtype in — no wrapper f32 cast

    # Each core's (8, 128) tile holds its partial mean replicated; combine partials.
    return jnp.sum(out_tiles[::_SUBLANES, 0])


def focal_loss_ref(logits, targets, gamma=2.0):
    """Pure-JAX reference mirroring the PyTorch module."""
    logp = jax.nn.log_softmax(logits.astype(jnp.float32), axis=-1)
    ce = -jnp.take_along_axis(logp, targets[:, None].astype(jnp.int32), axis=-1)[:, 0]
    pt = jnp.exp(-ce)
    return jnp.mean(((1.0 - pt) ** gamma) * ce)


if __name__ == "__main__":
    # FocalLoss has no learned parameters (alpha=None, gamma=2); inputs are
    # logits + integer targets.
    key = jax.random.PRNGKey(0)
    k_logits, k_targets = jax.random.split(key)

    N, C = 8, 16  # batch=8, num_classes=16
    logits = jax.random.normal(k_logits, (N, C), dtype=jnp.float32)
    targets = jax.random.randint(k_targets, (N,), 0, C, dtype=jnp.int32)

    loss = focal_loss(logits, targets, gamma=2.0)
    loss = jax.block_until_ready(loss)

    ref = focal_loss_ref(logits, targets, gamma=2.0)
    assert jnp.allclose(loss, ref, rtol=1e-5, atol=1e-5), (loss, ref)

    print("KERNEL_OK")
</pallas_src>

<mosaic_0001>
module attributes {stable_mosaic.version = 11 : i64} {
  func.func @_focal_loss_kernel(%arg0: i32, %arg1: i32, %arg2: memref<8x16xf32, #tpu.memory_space<vmem>>, %arg3: memref<8x1xi32, #tpu.memory_space<vmem>>, %arg4: memref<8x128xf32, #tpu.memory_space<vmem>>, %arg5: memref<8x1xf32, #tpu.memory_space<vmem>>) attributes {dimension_semantics = [#tpu.dimension_semantics<parallel>, #tpu.dimension_semantics<arbitrary>], iteration_bounds = array<i64: 1, 1>, scalar_prefetch = 0 : i64, scratch_operands = 1 : i64, tpu.core_type = #tpu.core_type<tc>, window_params = [{transform_indices = @transform_0, window_bounds = array<i64: 8, 16>}, {transform_indices = @transform_1, window_bounds = array<i64: 8, 1>}, {transform_indices = @transform_2, window_bounds = array<i64: 8, 128>}]} {
    %c0_i32 = arith.constant 0 : i32
    %0 = arith.cmpi eq, %arg1, %c0_i32 : i32
    %1 = arith.extui %0 : i1 to i32
    %c0_i32_0 = arith.constant 0 : i32
    %2 = arith.cmpi ne, %1, %c0_i32_0 : i32
    scf.if %2 {
      %cst_17 = arith.constant 0.000000e+00 : f32
      %40 = vector.broadcast %cst_17 : f32 to vector<8x1xf32>
      %c0_18 = arith.constant 0 : index
      %c0_19 = arith.constant 0 : index
      %41 = vector.load %arg5[%c0_18, %c0_19] : memref<8x1xf32, #tpu.memory_space<vmem>>, vector<8x1xf32>
      tpu.vector_store %arg5[%c0_18, %c0_19], %40 {strides = array<i32>} : memref<8x1xf32, #tpu.memory_space<vmem>>, vector<8x1xf32>,
    } else {
    }
    %c0 = arith.constant 0 : index
    %c0_1 = arith.constant 0 : index
    %3 = vector.load %arg2[%c0, %c0_1] : memref<8x16xf32, #tpu.memory_space<vmem>>, vector<8x16xf32>
    %c0_2 = arith.constant 0 : index
    %c0_3 = arith.constant 0 : index
    %4 = vector.load %arg3[%c0_2, %c0_3] : memref<8x1xi32, #tpu.memory_space<vmem>>, vector<8x1xi32>
    %cst = arith.constant dense<0xFF800000> : vector<8xf32>
    %5 = vector.multi_reduction <maximumf>, %3, %cst [1] : vector<8x16xf32> to vector<8xf32>
    %6 = vector.shape_cast %5 : vector<8xf32> to vector<8x1xf32>
    %7 = vector.broadcast %6 : vector<8x1xf32> to vector<8x16xf32>
    %8 = arith.subf %3, %7 : vector<8x16xf32>
    %9 = math.exp %8 : vector<8x16xf32>
    %cst_4 = arith.constant dense<0.000000e+00> : vector<8xf32>
    %10 = vector.multi_reduction <add>, %9, %cst_4 [1] : vector<8x16xf32> to vector<8xf32>
    %11 = vector.shape_cast %10 : vector<8xf32> to vector<8x1xf32>
    %12 = math.log %11 : vector<8x1xf32>
    %13 = tpu.iota {dimensions = array<i32: 1>} : vector<1x16xi32>
    %14 = vector.broadcast %13 : vector<1x16xi32> to vector<8x16xi32>
    %15 = vector.broadcast %4 : vector<8x1xi32> to vector<8x16xi32>
    %16 = arith.cmpi eq, %14, %15 : vector<8x16xi32>
    %cst_5 = arith.constant 0.000000e+00 : f32
    %17 = vector.broadcast %cst_5 : f32 to vector<8x16xf32>
    %18 = arith.select %16, %3, %17 : vector<8x16xi1>, vector<8x16xf32>
    %cst_6 = arith.constant dense<0.000000e+00> : vector<8xf32>
    %19 = vector.multi_reduction <add>, %18, %cst_6 [1] : vector<8x16xf32> to vector<8xf32>
    %20 = vector.shape_cast %19 : vector<8xf32> to vector<8x1xf32>
    %21 = arith.addf %12, %6 : vector<8x1xf32>
    %22 = arith.subf %21, %20 : vector<8x1xf32>
    %cst_7 = arith.constant 0.000000e+00 : f32
    %23 = vector.broadcast %cst_7 : f32 to vector<8x1xf32>
    %24 = arith.subf %23, %22 : vector<8x1xf32>
    %25 = math.exp %24 : vector<8x1xf32>
    %cst_8 = arith.constant 1.000000e+00 : f32
    %26 = vector.broadcast %cst_8 : f32 to vector<8x1xf32>
    %27 = arith.subf %26, %25 : vector<8x1xf32>
    %cst_9 = arith.constant 0.000000e+00 : f32
    %28 = vector.broadcast %cst_9 : f32 to vector<8x1xf32>
    %29 = arith.maximumf %27, %28 : vector<8x1xf32>
    %cst_10 = arith.constant 1.000000e+00 : f32
    %30 = vector.broadcast %cst_10 : f32 to vector<8x1xf32>
    %31 = arith.mulf %30, %29 : vector<8x1xf32>
    %32 = arith.mulf %31, %29 : vector<8x1xf32>
    %33 = arith.mulf %32, %22 : vector<8x1xf32>
    %c0_11 = arith.constant 0 : index
    %c0_12 = arith.constant 0 : index
    %34 = vector.load %arg5[%c0_11, %c0_12] : memref<8x1xf32, #tpu.memory_space<vmem>>, vector<8x1xf32>
    %35 = arith.addf %34, %33 : vector<8x1xf32>
    %c0_13 = arith.constant 0 : index
    %c0_14 = arith.constant 0 : index
    %36 = vector.load %arg5[%c0_13, %c0_14] : memref<8x1xf32, #tpu.memory_space<vmem>>, vector<8x1xf32>
    tpu.vector_store %arg5[%c0_13, %c0_14], %35 {strides = array<i32>} : memref<8x1xf32, #tpu.memory_space<vmem>>, vector<8x1xf32>,
    %c0_i32_15 = arith.constant 0 : i32
    %37 = arith.cmpi eq, %arg1, %c0_i32_15 : i32
    %38 = arith.extui %37 : i1 to i32
    %c0_i32_16 = arith.constant 0 : i32
    %39 = arith.cmpi ne, %38, %c0_i32_16 : i32
    scf.if %39 {
      %c0_17 = arith.constant 0 : index
      %c0_18 = arith.constant 0 : index
      %40 = vector.load %arg5[%c0_17, %c0_18] : memref<8x1xf32, #tpu.memory_space<vmem>>, vector<8x1xf32>
      %41 = vector.shape_cast %40 : vector<8x1xf32> to vector<1x8x1xf32>
      %cst_19 = arith.constant dense<0.000000e+00> : vector<1xf32>
      %42 = vector.multi_reduction <add>, %41, %cst_19 [1, 2] : vector<1x8x1xf32> to vector<1xf32>
      %43 = vector.shape_cast %42 : vector<1xf32> to vector<1x1x1xf32>
      %44 = vector.extract %43[0, 0, 0] : f32 from vector<1x1x1xf32>
      %45 = vector.broadcast %44 : f32 to vector<1x1xf32>
      %cst_20 = arith.constant 1.250000e-01 : f32
      %46 = vector.broadcast %cst_20 : f32 to vector<1x1xf32>
      %47 = arith.mulf %45, %46 : vector<1x1xf32>
      %48 = vector.shape_cast %47 : vector<1x1xf32> to vector<1x1xf32>
      %49 = vector.broadcast %48 : vector<1x1xf32> to vector<8x128xf32>
      %c0_21 = arith.constant 0 : index
      %c0_22 = arith.constant 0 : index
      %50 = vector.load %arg4[%c0_21, %c0_22] : memref<8x128xf32, #tpu.memory_space<vmem>>, vector<8x128xf32>
      tpu.vector_store %arg4[%c0_21, %c0_22], %49 {strides = array<i32>} : memref<8x128xf32, #tpu.memory_space<vmem>>, vector<8x128xf32>,
    } else {
    }
    return
  }
  func.func @transform_0(%arg0: i32, %arg1: i32) -> (i32, i32) {
    %c1_i32 = arith.constant 1 : i32
    %0 = arith.muli %arg0, %c1_i32 : i32
    %1 = arith.addi %0, %arg1 : i32
    %c0_i32 = arith.constant 0 : i32
    %c0_i32_0 = arith.constant 0 : i32
    return %1, %c0_i32 : i32, i32
  }
  func.func @transform_1(%arg0: i32, %arg1: i32) -> (i32, i32) {
    %c1_i32 = arith.constant 1 : i32
    %0 = arith.muli %arg0, %c1_i32 : i32
    %1 = arith.addi %0, %arg1 : i32
    %c0_i32 = arith.constant 0 : i32
    %c0_i32_0 = arith.constant 0 : i32
    return %1, %c0_i32 : i32, i32
  }
  func.func @transform_2(%arg0: i32, %arg1: i32) -> (i32, i32) {
    %c0_i32 = arith.constant 0 : i32
    %c0_i32_0 = arith.constant 0 : i32
    return %arg0, %c0_i32 : i32, i32
  }
}

</mosaic_0001>

<llo_original>
// kernel: tpu_custom_call.1
$region0: #{tpu_custom_call.1}
  #allocation0 [shape = 'u32[]', space=smem, size = 0x4, offset = 0x4, fixed_abs, tag = 'smem constant byte address 0x4 - core index']
  #allocation1 [shape = 'u32[144,128]{1,0:T(1,128)}', space=vmem, size = 0x12000, scoped, tag = 'internal scratch']
  #allocation2 [shape = 'f32[8,1]{1,0:T(8,128)}', space=vmem, size = 0x1000, scoped, tag = 'scratch operand']
  %s0 = inlined_call_operand.vmem [shape: f32[8,16], index: 0, kind: input, shape index: {}]
  %s1 = inlined_call_operand.vmem [shape: s32[8,1], index: 1, kind: input, shape index: {}]
  %s2 = inlined_call_operand.hbm [shape: f32[8,128], index: 2, kind: output, shape index: {}]
  %s3 = sld [smem:[#allocation0]]
  $region26: #{tpu_custom_call.1} parent=0
    _
  %s5 = ssub.s32 1, %s3
  %s6 = scalar_select 0, %s5, %s3
  $region1: #{tpu_custom_call.1} parent=0
    #allocation3 [shape = 'u8[4096]{0}', space=vmem, size = 0x1000, scoped, tag = 'output window, operand 0, single buffered']
    #allocation4 [shape = 's32[1]{0}', space=sflag, size = 0x4, scoped, tag = 'scoped memory for tpu_custom_call.1']
    %7 = vsyncpa [#allocation4], 0
    // Predicated region
    $region2: #{tpu_custom_call.1} parent=1 // pred_check
      _
    $region3: #{tpu_custom_call.1} parent=1 // pred_check_branch
      %9 = sbr.rel (0) target = $region5
    $region4: #{tpu_custom_call.1} parent=1 // pred_region
      %s10 = sadd.s32 0, 0
      %p11 = scmp.lt.s32.totalorder %s10, 0
      %s12 = scalar_select %p11, %s10, 0
      %s13 = smul.addr %s12, 8
      %s14 = scalar_lea.vmem %s0, %s13
      %s15 = sadd.s32 0, 0
    $region5: #{tpu_custom_call.1} parent=1 // pred_fallthru
      _
    // Predicated region
    $region6: #{tpu_custom_call.1} parent=1 // pred_check
      _
    $region7: #{tpu_custom_call.1} parent=1 // pred_check_branch
      %17 = sbr.rel (0) target = $region9
    $region8: #{tpu_custom_call.1} parent=1 // pred_region
      %s18 = sadd.s32 0, 0
      %p19 = scmp.lt.s32.totalorder %s18, 0
      %s20 = scalar_select %p19, %s18, 0
      %s21 = smul.addr %s20, 8
      %s22 = scalar_lea.vmem %s1, %s21
      %s23 = sadd.s32 0, 0
    $region9: #{tpu_custom_call.1} parent=1 // pred_fallthru
      _
    %s24 = sadd.s32 0, 0
    %p25 = scmp.lt.s32.totalorder %s24, 0
    %s26 = scalar_select %p25, %s24, 0
    %s27 = smul.addr %s26, 8
    %s28 = scalar_lea.vmem %s0, %s27
    %s29 = sadd.s32 0, 0
    %p30 = scmp.lt.s32.totalorder %s29, 0
    %s31 = scalar_select %p30, %s29, 0
    %s32 = smul.addr %s31, 8
    %s33 = scalar_lea.vmem %s1, %s32
    %s34 = sadd.s32 0, 0
    %p35 = scmp.lt.s32.totalorder %s34, 0
    %s36 = scalar_select %p35, %s34, 0
    %s37 = smul.addr %s36, 8
    %s38 = scalar_lea.vmem %s0, %s37
    %s39 = sadd.s32 0, 0
    %s40 = sadd.s32 0, 0
    %p41 = scmp.lt.s32.totalorder %s40, 0
    %s42 = scalar_select %p41, %s40, 0
    %s43 = smul.addr %s42, 8
    %s44 = scalar_lea.vmem %s1, %s43
    %s45 = sadd.s32 0, 0
    %p46 = scmp.eq.s32.totalorder 0, 0
    // Predicated region
    $region10: #{tpu_custom_call.1} parent=1 // pred_check
      %p47 = pneg %p46
    $region11: #{tpu_custom_call.1} parent=1 // pred_check_branch
      %49 = sbr.rel (%p47) target = $region13
    $region12: #{tpu_custom_call.1} parent=1 // pred_region
      %vm50 = vcmask 7168
      %51 = vst.msk [vmem:[#allocation2] sm:$0xff] %vm50, 0.0
    $region13: #{tpu_custom_call.1} parent=1 // pred_fallthru
      _
    %v52 = vld [vmem:[%s38] sm:$0xff]
    %v53 = vld [vmem:[%s44] sm:$0xff]
    %vm54 = vcmask 130048
    %v55 = vsel %vm54, %v52, -inf
    %56 = vmax.xlane.f32.xlu0 %v55
    %v57 = vpop.xlane.xlu0 %56
    %v58 = vsub.f32 %v52, %v57
    %v59 = vmul.f32 %v58, 1.442695
    %v60 = vpow.pop %v59
    %v61 = vsel %vm54, %v60, 0.0
    %62 = vadd.xlane.f32.xlu0 %v61
    %v63 = vpop.xlane.xlu0 %62
    %v64 = vlog2.pop %v63
    %v65 = vmul.f32 %v64, 0.6931472
    %v66 = vlaneseq
    %v67 = vand.u32 %v66, 127
    %68 = vset.pattern.permute.xlu0 0
    %69 = vperm.xlu0 %68, %v53
    %v70 = vpop.permute.xlu0 %69
    %vm71 = vcmp.eq.s32.totalorder %v67, %v70
    %v72 = vsel %vm71, %v52, 0.0
    %v73 = vsel %vm54, %v72, 0.0
    %74 = vadd.xlane.f32.xlu0 %v73
    %v75 = vpop.xlane.xlu0 %74
    %v76 = vadd.f32 %v65, %v57
    %v77 = vsub.f32 %v76, %v75
    %v78 = vsub.f32 0.0, %v77
    %v79 = vmul.f32 %v78, 1.442695
    %v80 = vpow.pop %v79
    %v81 = vsub.f32 1.0, %v80
    %v82 = vmax.f32 %v81, 0.0
    %v83 = vmul.f32 %v82, %v82
    %v84 = vmul.f32 %v83, %v77
    %v85 = vld [vmem:[#allocation2] sm:$0xff]
    %v86 = vadd.f32 %v85, %v84
    %vm87 = vcmask 7168
    %88 = vst.msk [vmem:[#allocation2] sm:$0xff] %vm87, %v86
    // Predicated region
    $region14: #{tpu_custom_call.1} parent=1 // pred_check
      %p89 = pneg %p46
    $region15: #{tpu_custom_call.1} parent=1 // pred_check_branch
      %91 = sbr.rel (%p89) target = $region17
    $region16: #{tpu_custom_call.1} parent=1 // pred_region
      %v92 = vld [vmem:[#allocation2] sm:$0xff]
      %v93 = vsel %vm87, %v92, 0.0
      %94 = vadd.xlane.f32.xlu0 %v93
      %v95 = vpop.xlane.xlu0 %94
      %v96 = vrot.slane %v95, 4
      %v97 = vadd.f32 %v95, %v96
      %v98 = vrot.slane %v97, 2
      %v99 = vadd.f32 %v97, %v98
      %v100 = vrot.slane %v99, 1
      %v101 = vadd.f32 %v99, %v100
      %s102 = vtos %v101
      %v103 = vstv %s102
      %v104 = vmul.f32 %v103, 0.125
      %105 = vst [vmem:[#allocation3] sm:$0xff] %v104
    $region17: #{tpu_custom_call.1} parent=1 // pred_fallthru
      _
    // Predicated region
    $region18: #{tpu_custom_call.1} parent=1 // pred_check
      _
    $region19: #{tpu_custom_call.1} parent=1 // pred_check_branch
      %107 = sbr.rel (0) target = $region21
    $region20: #{tpu_custom_call.1} parent=1 // pred_region
      %s109 = ssub.s32 128, 128
      %110 = vsyncadd [#allocation4], %s109
      %s112 = sshll.u32 [#allocation3], 4
      %s113 = int_to_ptr.vmem [resolvable:$true] %s112
      %115 = dma.vmem_to_hbm [thread:$0]  %s113, 128, %s2, [#allocation4]
    $region21: #{tpu_custom_call.1} parent=1 // pred_fallthru
      _
    // Predicated region
    $region22: #{tpu_custom_call.1} parent=1 // pred_check
      _
    $region23: #{tpu_custom_call.1} parent=1 // pred_check_branch
      %117 = sbr.rel (0) target = $region25
    $region24: #{tpu_custom_call.1} parent=1 // pred_region
      %118 = dma.done [#allocation4], 128
    $region25: #{tpu_custom_call.1} parent=1 // pred_fallthru
      _
    %119 = vsyncpa [#allocation4], 1

</llo_original>
